<compile_context>
chip_gen: v7x
topology: tpu7x:2x2x1
jax: 0.10.0
libtpu: 0.0.40
codegen_flags: <defaults>
</compile_context>

<pallas_src>
import functools

import jax
import jax.numpy as jnp
from jax.experimental import pallas as pl
from jax.experimental.pallas import tpu as pltpu

IN_DIM = 22
HID_DIM = 50
OUT_DIM = 2


def mlp_kernel(x_ref, w1_ref, b1_ref, w2_ref, b2_ref, out_ref):
    # Cast x tile to bf16 in-kernel (VPU) so the wrapper never touches x.
    x = x_ref[...].astype(jnp.bfloat16)

    # hidden = relu(x @ W1 + b1)  -- bf16 MXU matmul, f32 accumulate
    h = jnp.dot(x, w1_ref[...], preferred_element_type=jnp.float32)
    h = jnp.maximum(h + b1_ref[...], 0.0)          # bias + ReLU in f32 (VPU)

    # out = hidden @ W2 + b2      -- feed MXU bf16 again, f32 accumulate
    o = jnp.dot(h.astype(jnp.bfloat16), w2_ref[...],
                preferred_element_type=jnp.float32)
    out_ref[...] = (o + b2_ref[...]).astype(out_ref.dtype)


def _round_up(n, m):
    return ((n + m - 1) // m) * m


def _choose_tile(batch, block_batch):
    """Batch tile: multiple of 16 (bf16 sublane pack), capped at block_batch,
    and split into >=2 grid steps for large batches (v7x has 2 TensorCores)."""
    rounded = _round_up(batch, 16)
    min_blocks = 2 if rounded >= 2048 else 1
    blocks = max(min_blocks, pl.cdiv(rounded, block_batch))
    return _round_up(pl.cdiv(batch, blocks), 16)


@functools.partial(jax.jit, static_argnames=("block_batch",))
def net_forward(x, w1, b1, w2, b2, *, block_batch=4096):
    """y = relu(x @ W1 + b1) @ W2 + b2  (weights pre-transposed vs. PyTorch)."""
    batch = x.shape[0]
    tb = _choose_tile(batch, block_batch)
    grid = (pl.cdiv(batch, tb),)

    # Weights are tiny (~10 KB): casting them here is negligible; they stay
    # resident in VMEM across grid steps via constant index_maps.
    w1_bf = w1.astype(jnp.bfloat16)
    w2_bf = w2.astype(jnp.bfloat16)

    return pl.pallas_call(
        mlp_kernel,
        out_shape=jax.ShapeDtypeStruct((batch, OUT_DIM), jnp.float32),
        grid=grid,
        in_specs=[
            pl.BlockSpec((tb, IN_DIM), lambda i: (i, 0)),        # x tile (streamed, f32)
            pl.BlockSpec((IN_DIM, HID_DIM), lambda i: (0, 0)),   # W1 (resident)
            pl.BlockSpec((1, HID_DIM), lambda i: (0, 0)),        # b1 (resident)
            pl.BlockSpec((HID_DIM, OUT_DIM), lambda i: (0, 0)),  # W2 (resident)
            pl.BlockSpec((1, OUT_DIM), lambda i: (0, 0)),        # b2 (resident)
        ],
        out_specs=pl.BlockSpec((tb, OUT_DIM), lambda i: (i, 0)),
        compiler_params=pltpu.CompilerParams(
            dimension_semantics=("parallel",),       # shard batch across TCs (v7x)
            vmem_limit_bytes=48 * 1024 * 1024,       # headroom for big tiles on v5e/v7x
        ),
    )(x, w1_bf, b1, w2_bf, b2)


def init_params(key):
    """Deterministic init mimicking PyTorch nn.Linear default (uniform +-1/sqrt(fan_in))."""
    k1, k2, k3, k4 = jax.random.split(key, 4)
    bound1 = 1.0 / jnp.sqrt(jnp.float32(IN_DIM))
    bound2 = 1.0 / jnp.sqrt(jnp.float32(HID_DIM))
    w1 = jax.random.uniform(k1, (IN_DIM, HID_DIM), jnp.float32, -bound1, bound1)
    b1 = jax.random.uniform(k2, (1, HID_DIM), jnp.float32, -bound1, bound1)
    w2 = jax.random.uniform(k3, (HID_DIM, OUT_DIM), jnp.float32, -bound2, bound2)
    b2 = jax.random.uniform(k4, (1, OUT_DIM), jnp.float32, -bound2, bound2)
    return w1, b1, w2, b2


if __name__ == "__main__":
    key = jax.random.PRNGKey(0)
    pkey, xkey = jax.random.split(key)

    w1, b1, w2, b2 = init_params(pkey)

    batch = 64
    x = jax.random.normal(xkey, (batch, IN_DIM), jnp.float32)

    out = net_forward(x, w1, b1, w2, b2)
    out = jax.block_until_ready(out)
    assert out.shape == (batch, OUT_DIM)

    # Reference matching the kernel's bf16-input / f32-accumulate arithmetic.
    h_ref = jnp.maximum(
        jnp.dot(x.astype(jnp.bfloat16), w1.astype(jnp.bfloat16),
                preferred_element_type=jnp.float32) + b1, 0.0)
    ref_bf16 = jnp.dot(h_ref.astype(jnp.bfloat16), w2.astype(jnp.bfloat16),
                       preferred_element_type=jnp.float32) + b2
    assert jnp.allclose(out, ref_bf16, atol=1e-3, rtol=1e-3)

    # Sanity check against the pure-f32 forward (loose tolerance for bf16 inputs).
    ref_f32 = jnp.maximum(x @ w1 + b1, 0.0) @ w2 + b2
    assert jnp.allclose(out, ref_f32, atol=5e-2, rtol=5e-2)

    # Exercise a ragged batch (not a multiple of the tile) to cover the
    # masked trailing block path.
    x2 = jax.random.normal(jax.random.PRNGKey(1), (37, IN_DIM), jnp.float32)
    out2 = jax.block_until_ready(net_forward(x2, w1, b1, w2, b2))
    ref2 = jnp.maximum(x2 @ w1 + b1, 0.0) @ w2 + b2
    assert out2.shape == (37, OUT_DIM)
    assert jnp.allclose(out2, ref2, atol=5e-2, rtol=5e-2)

    print("KERNEL_OK")
</pallas_src>

<mosaic_0001>
module attributes {stable_mosaic.version = 11 : i64} {
  func.func @mlp_kernel(%arg0: i32, %arg1: memref<64x22xf32, #tpu.memory_space<vmem>>, %arg2: memref<22x50xbf16, #tpu.memory_space<vmem>>, %arg3: memref<1x50xf32, #tpu.memory_space<vmem>>, %arg4: memref<50x2xbf16, #tpu.memory_space<vmem>>, %arg5: memref<1x2xf32, #tpu.memory_space<vmem>>, %arg6: memref<64x2xf32, #tpu.memory_space<vmem>>) attributes {dimension_semantics = [#tpu.dimension_semantics<parallel>], iteration_bounds = array<i64: 1>, scalar_prefetch = 0 : i64, scratch_operands = 0 : i64, tpu.core_type = #tpu.core_type<tc>, window_params = [{transform_indices = @transform_0, window_bounds = array<i64: 64, 22>}, {pipeline_mode = #tpu.pipeline_mode<synchronous>, transform_indices = @transform_1, window_bounds = array<i64: 22, 50>}, {pipeline_mode = #tpu.pipeline_mode<synchronous>, transform_indices = @transform_2, window_bounds = array<i64: 1, 50>}, {pipeline_mode = #tpu.pipeline_mode<synchronous>, transform_indices = @transform_3, window_bounds = array<i64: 50, 2>}, {pipeline_mode = #tpu.pipeline_mode<synchronous>, transform_indices = @transform_4, window_bounds = array<i64: 1, 2>}, {transform_indices = @transform_5, window_bounds = array<i64: 64, 2>}]} {
    %c0 = arith.constant 0 : index
    %c0_0 = arith.constant 0 : index
    %0 = vector.load %arg1[%c0, %c0_0] : memref<64x22xf32, #tpu.memory_space<vmem>>, vector<64x22xf32>
    %1 = arith.truncf %0 : vector<64x22xf32> to vector<64x22xbf16>
    %c0_1 = arith.constant 0 : index
    %c0_2 = arith.constant 0 : index
    %2 = vector.load %arg2[%c0_1, %c0_2] : memref<22x50xbf16, #tpu.memory_space<vmem>>, vector<22x50xbf16>
    %cst = arith.constant dense<0.000000e+00> : vector<64x50xf32>
    %3 = tpu.matmul %1, %2, %cst {dimension_numbers = #tpu.dot_dimension_numbers<[1], [0], [0], [1], [0, 0, 1, 1], [], []>} : vector<64x22xbf16>, vector<22x50xbf16>, vector<64x50xf32> -> vector<64x50xf32>
    %c0_3 = arith.constant 0 : index
    %c0_4 = arith.constant 0 : index
    %4 = vector.load %arg3[%c0_3, %c0_4] : memref<1x50xf32, #tpu.memory_space<vmem>>, vector<1x50xf32>
    %5 = vector.broadcast %4 : vector<1x50xf32> to vector<64x50xf32>
    %6 = arith.addf %3, %5 : vector<64x50xf32>
    %cst_5 = arith.constant 0.000000e+00 : f32
    %7 = vector.broadcast %cst_5 : f32 to vector<64x50xf32>
    %8 = arith.maximumf %6, %7 : vector<64x50xf32>
    %9 = arith.truncf %8 : vector<64x50xf32> to vector<64x50xbf16>
    %c0_6 = arith.constant 0 : index
    %c0_7 = arith.constant 0 : index
    %10 = vector.load %arg4[%c0_6, %c0_7] : memref<50x2xbf16, #tpu.memory_space<vmem>>, vector<50x2xbf16>
    %cst_8 = arith.constant dense<0.000000e+00> : vector<64x2xf32>
    %11 = tpu.matmul %9, %10, %cst_8 {dimension_numbers = #tpu.dot_dimension_numbers<[1], [0], [0], [1], [0, 0, 1, 1], [], []>} : vector<64x50xbf16>, vector<50x2xbf16>, vector<64x2xf32> -> vector<64x2xf32>
    %c0_9 = arith.constant 0 : index
    %c0_10 = arith.constant 0 : index
    %12 = vector.load %arg5[%c0_9, %c0_10] : memref<1x2xf32, #tpu.memory_space<vmem>>, vector<1x2xf32>
    %13 = vector.broadcast %12 : vector<1x2xf32> to vector<64x2xf32>
    %14 = arith.addf %11, %13 : vector<64x2xf32>
    %c0_11 = arith.constant 0 : index
    %c0_12 = arith.constant 0 : index
    %15 = vector.load %arg6[%c0_11, %c0_12] : memref<64x2xf32, #tpu.memory_space<vmem>>, vector<64x2xf32>
    tpu.vector_store %arg6[%c0_11, %c0_12], %14 {strides = array<i32>} : memref<64x2xf32, #tpu.memory_space<vmem>>, vector<64x2xf32>,
    return
  }
  func.func @transform_0(%arg0: i32) -> (i32, i32) {
    %c0_i32 = arith.constant 0 : i32
    %c0_i32_0 = arith.constant 0 : i32
    return %arg0, %c0_i32 : i32, i32
  }
  func.func @transform_1(%arg0: i32) -> (i32, i32) {
    %c0_i32 = arith.constant 0 : i32
    %c0_i32_0 = arith.constant 0 : i32
    %c0_i32_1 = arith.constant 0 : i32
    return %c0_i32, %c0_i32_0 : i32, i32
  }
  func.func @transform_2(%arg0: i32) -> (i32, i32) {
    %c0_i32 = arith.constant 0 : i32
    %c0_i32_0 = arith.constant 0 : i32
    %c0_i32_1 = arith.constant 0 : i32
    return %c0_i32, %c0_i32_0 : i32, i32
  }
  func.func @transform_3(%arg0: i32) -> (i32, i32) {
    %c0_i32 = arith.constant 0 : i32
    %c0_i32_0 = arith.constant 0 : i32
    %c0_i32_1 = arith.constant 0 : i32
    return %c0_i32, %c0_i32_0 : i32, i32
  }
  func.func @transform_4(%arg0: i32) -> (i32, i32) {
    %c0_i32 = arith.constant 0 : i32
    %c0_i32_0 = arith.constant 0 : i32
    %c0_i32_1 = arith.constant 0 : i32
    return %c0_i32, %c0_i32_0 : i32, i32
  }
  func.func @transform_5(%arg0: i32) -> (i32, i32) {
    %c0_i32 = arith.constant 0 : i32
    %c0_i32_0 = arith.constant 0 : i32
    return %arg0, %c0_i32 : i32, i32
  }
}

</mosaic_0001>

<llo_original>
// kernel: net_forward.1
$region0: #{net_forward.1}
  #allocation0 [shape = 'u32[]', space=smem, size = 0x4, offset = 0x4, fixed_abs, tag = 'smem constant byte address 0x4 - core index']
  #allocation1 [shape = 'u32[144,128]{1,0:T(1,128)}', space=vmem, size = 0x12000, scoped, tag = 'internal scratch']
  %s0 = inlined_call_operand.vmem [shape: f32[64,22], index: 0, kind: input, shape index: {}]
  %s1 = inlined_call_operand.vmem [shape: bf16[22,50], index: 1, kind: input, shape index: {}]
  %s2 = inlined_call_operand.vmem [shape: f32[1,50], index: 2, kind: input, shape index: {}]
  %s3 = inlined_call_operand.vmem [shape: bf16[50,2], index: 3, kind: input, shape index: {}]
  %s4 = inlined_call_operand.vmem [shape: f32[1,2], index: 4, kind: input, shape index: {}]
  %s5 = inlined_call_operand.vmem [shape: f32[64,2], index: 5, kind: output, shape index: {}]
  %s6 = sld [smem:[#allocation0]]
  $region30: #{net_forward.1} parent=0
    _
  %s8 = ssub.s32 1, %s6
  %s9 = scalar_select 0, %s8, %s6
  // Predicated region
  $region2: #{net_forward.1} parent=0 // pred_check
    _
  $region3: #{net_forward.1} parent=0 // pred_check_branch
    %11 = sbr.rel (0) target = $region5
  $region4: #{net_forward.1} parent=0 // pred_region
    _
  $region5: #{net_forward.1} parent=0 // pred_fallthru
    _
  // Predicated region
  $region6: #{net_forward.1} parent=0 // pred_check
    _
  $region7: #{net_forward.1} parent=0 // pred_check_branch
    %13 = sbr.rel (0) target = $region9
  $region8: #{net_forward.1} parent=0 // pred_region
    _
  $region9: #{net_forward.1} parent=0 // pred_fallthru
    _
  // Predicated region
  $region10: #{net_forward.1} parent=0 // pred_check
    _
  $region11: #{net_forward.1} parent=0 // pred_check_branch
    %15 = sbr.rel (0) target = $region13
  $region12: #{net_forward.1} parent=0 // pred_region
    _
  $region13: #{net_forward.1} parent=0 // pred_fallthru
    _
  // Predicated region
  $region14: #{net_forward.1} parent=0 // pred_check
    _
  $region15: #{net_forward.1} parent=0 // pred_check_branch
    %17 = sbr.rel (0) target = $region17
  $region16: #{net_forward.1} parent=0 // pred_region
    _
  $region17: #{net_forward.1} parent=0 // pred_fallthru
    _
  // Predicated region
  $region18: #{net_forward.1} parent=0 // pred_check
    _
  $region19: #{net_forward.1} parent=0 // pred_check_branch
    %19 = sbr.rel (0) target = $region21
  $region20: #{net_forward.1} parent=0 // pred_region
    _
  $region21: #{net_forward.1} parent=0 // pred_fallthru
    _
  %v21 = vld [vmem:[%s0] sm:$0xff]
  %v22 = vld [vmem:[%s0 + $0x8] sm:$0xff]
  %v23 = vld [vmem:[%s0 + $0x10] sm:$0xff]
  %v24 = vld [vmem:[%s0 + $0x18] sm:$0xff]
  %v25 = vld [vmem:[%s0 + $0x20] sm:$0xff]
  %v26 = vld [vmem:[%s0 + $0x28] sm:$0xff]
  %v27 = vld [vmem:[%s0 + $0x30] sm:$0xff]
  %v28 = vld [vmem:[%s0 + $0x38] sm:$0xff]
  %v29 = vpack.c.bf16 %v22, %v21
  %v30 = vpack.c.bf16 %v24, %v23
  %v31 = vpack.c.bf16 %v26, %v25
  %v32 = vpack.c.bf16 %v28, %v27
  %v33 = vld [vmem:[%s1] sm:$0xf]
  %v34 = vld [vmem:[%s1 + $0x4] sm:$0xf]
  %v35 = vld [vmem:[%s1 + $0x8] sm:$0x7]
  %v36 = vld [vmem:[%s2] sm:$0x1]
  %v38 = vlaneseq
  %v39 = vshrl.u32 %v38, 7
  %v40 = vsub.s32 0, %v39
  %v41 = vrot.slane %v36, %v40
  %v46 = vunpack.c.l.b16 %v33
  %v47 = vunpack.c.l.b16 %v34
  %v48 = vunpack.c.l.b16 %v35
  %v49 = vpack.c.b16 %v47, %v46
  %v50 = vpack.c.b16 %v48, %v48
  %vm52 = vcmask 179200
  %v54 = vsel %vm52, %v29, 0
  %v57 = vsel %vm52, %v30, 0
  %v60 = vsel %vm52, %v31, 0
  %v63 = vsel %vm52, %v32, 0
  %vm65 = vcmask 1042432
  %v67 = vsel %vm65, %v50, 0
  %69 = vmatprep.subr.bf16.mxu0 0
  %70 = vmatpush1.bf16.msra.mxu0 %v49
  %71 = vmatprep.subr.bf16.mxu0 0
  %72 = vmatpush1.bf16.msra.mxu0 %v67
  %73 = vmatprep.subr.bf16.mxu0 0
  %74 = vmatpush1.bf16.msra.mxu0 0
  %75 = vmatprep.subr.bf16.mxu0 0
  %76 = vmatpush1.bf16.msra.mxu0 0
  %77 = vmatprep.subr.bf16.mxu0 0
  %78 = vmatpush1.bf16.msra.mxu0 0
  %79 = vmatprep.subr.bf16.mxu0 0
  %80 = vmatpush1.bf16.msra.mxu0 0
  %81 = vmatprep.subr.bf16.mxu0 0
  %82 = vmatpush1.bf16.msra.mxu0 0
  %83 = vmatprep.subr.bf16.mxu0 0
  %84 = vmatpush1.bf16.msra.mxu0 0
  %85 = vmatprep.subr.bf16.mxu0 0
  %86 = vmatpush1.bf16.msra.mxu0 0
  %87 = vmatprep.subr.bf16.mxu0 0
  %88 = vmatpush1.bf16.msra.mxu0 0
  %89 = vmatprep.subr.bf16.mxu0 0
  %90 = vmatpush1.bf16.msra.mxu0 0
  %91 = vmatprep.subr.bf16.mxu0 0
  %92 = vmatpush1.bf16.msra.mxu0 0
  %93 = vmatprep.subr.bf16.mxu0 0
  %94 = vmatpush1.bf16.msra.mxu0 0
  %95 = vmatprep.subr.bf16.mxu0 0
  %96 = vmatpush1.bf16.msra.mxu0 0
  %97 = vmatprep.subr.bf16.mxu0 0
  %98 = vmatpush1.bf16.msra.mxu0 0
  %99 = vmatprep.subr.bf16.mxu0 0
  %100 = vmatpush1.bf16.msra.mxu0 0
  %101 = vmatprep.mubr.bf16.mxu0 0
  %102 = vmatmul.mubr.bf16.gmra.mrb[0].mxu0 %v54
  %v103 = vpop.f32.mrb[0].mxu0
  %v104 = vadd.f32 %v41, %v103
  %v105 = vpop.f32.mrb[0].mxu0
  %v106 = vpop.f32.mrb[0].mxu0
  %v107 = vadd.f32 %v41, %v106
  %v108 = vpop.f32.mrb[0].mxu0
  %109 = vmatprep.mubr.bf16.mxu0 0
  %110 = vmatmul.mubr.bf16.gmra.mrb[0].mxu0 %v57
  %v111 = vpop.f32.mrb[0].mxu0
  %v112 = vadd.f32 %v41, %v111
  %v113 = vpop.f32.mrb[0].mxu0
  %v114 = vpop.f32.mrb[0].mxu0
  %v115 = vadd.f32 %v41, %v114
  %v116 = vpop.f32.mrb[0].mxu0
  %117 = vmatprep.mubr.bf16.mxu0 0
  %118 = vmatmul.mubr.bf16.gmra.mrb[0].mxu0 %v60
  %v119 = vpop.f32.mrb[0].mxu0
  %v120 = vadd.f32 %v41, %v119
  %v121 = vpop.f32.mrb[0].mxu0
  %v122 = vpop.f32.mrb[0].mxu0
  %v123 = vadd.f32 %v41, %v122
  %v124 = vpop.f32.mrb[0].mxu0
  %125 = vmatprep.mubr.bf16.mxu0 0
  %126 = vmatmul.mubr.bf16.gmra.mrb[0].mxu0 %v63
  %v127 = vpop.f32.mrb[0].mxu0
  %v128 = vadd.f32 %v41, %v127
  %v129 = vpop.f32.mrb[0].mxu0
  %v130 = vpop.f32.mrb[0].mxu0
  %v131 = vadd.f32 %v41, %v130
  %v132 = vpop.f32.mrb[0].mxu0
  %133 = vdwg.mxu0
  %v134 = vmax.f32 %v104, 0.0
  %v135 = vmax.f32 %v107, 0.0
  %v136 = vmax.f32 %v112, 0.0
  %v137 = vmax.f32 %v115, 0.0
  %v138 = vmax.f32 %v120, 0.0
  %v139 = vmax.f32 %v123, 0.0
  %v140 = vmax.f32 %v128, 0.0
  %v141 = vmax.f32 %v131, 0.0
  %v142 = vpack.c.bf16 %v135, %v134
  %v143 = vpack.c.bf16 %v137, %v136
  %v144 = vpack.c.bf16 %v139, %v138
  %v145 = vpack.c.bf16 %v141, %v140
  %v146 = vld [vmem:[%s3] sm:$0xf]
  %v147 = vld [vmem:[%s3 + $0x4] sm:$0xf]
  %v148 = vld [vmem:[%s3 + $0x8] sm:$0xf]
  %v149 = vld [vmem:[%s3 + $0xc] sm:$0xf]
  %v150 = vld [vmem:[%s3 + $0x10] sm:$0xf]
  %v151 = vld [vmem:[%s3 + $0x14] sm:$0xf]
  %v152 = vld [vmem:[%s3 + $0x18] sm:$0x1]
  %v153 = vld [vmem:[%s4] sm:$0x1]
  %v155 = vlaneseq
  %v156 = vshrl.u32 %v155, 7
  %v157 = vsub.s32 0, %v156
  %v158 = vrot.slane %v153, %v157
  %v167 = vunpack.c.l.b16 %v146
  %v168 = vunpack.c.l.b16 %v147
  %v169 = vunpack.c.l.b16 %v148
  %v170 = vunpack.c.l.b16 %v149
  %v171 = vunpack.c.l.b16 %v150
  %v172 = vunpack.c.l.b16 %v151
  %v173 = vunpack.c.l.b16 %v152
  %v174 = vpack.c.b16 %v168, %v167
  %v175 = vpack.c.b16 %v170, %v169
  %v176 = vpack.c.b16 %v172, %v171
  %v177 = vpack.c.b16 %v173, %v173
  %vm181 = vcmask 408576
  %v183 = vsel %vm181, %v142, 0
  %v186 = vsel %vm181, %v143, 0
  %v189 = vsel %vm181, %v144, 0
  %v192 = vsel %vm181, %v145, 0
  %vm194 = vcmask 1040384
  %v196 = vsel %vm194, %v177, 0
  %198 = vmatprep.subr.bf16.mxu0 0
  %199 = vmatpush1.bf16.msra.mxu0 %v174
  %200 = vmatprep.subr.bf16.mxu0 0
  %201 = vmatpush1.bf16.msra.mxu0 %v175
  %202 = vmatprep.subr.bf16.mxu0 0
  %203 = vmatpush1.bf16.msra.mxu0 %v176
  %204 = vmatprep.subr.bf16.mxu0 0
  %205 = vmatpush1.bf16.msra.mxu0 %v196
  %206 = vmatprep.subr.bf16.mxu0 0
  %207 = vmatpush1.bf16.msra.mxu0 0
  %208 = vmatprep.subr.bf16.mxu0 0
  %209 = vmatpush1.bf16.msra.mxu0 0
  %210 = vmatprep.subr.bf16.mxu0 0
  %211 = vmatpush1.bf16.msra.mxu0 0
  %212 = vmatprep.subr.bf16.mxu0 0
  %213 = vmatpush1.bf16.msra.mxu0 0
  %214 = vmatprep.subr.bf16.mxu0 0
  %215 = vmatpush1.bf16.msra.mxu0 0
  %216 = vmatprep.subr.bf16.mxu0 0
  %217 = vmatpush1.bf16.msra.mxu0 0
  %218 = vmatprep.subr.bf16.mxu0 0
  %219 = vmatpush1.bf16.msra.mxu0 0
  %220 = vmatprep.subr.bf16.mxu0 0
  %221 = vmatpush1.bf16.msra.mxu0 0
  %222 = vmatprep.subr.bf16.mxu0 0
  %223 = vmatpush1.bf16.msra.mxu0 0
  %224 = vmatprep.subr.bf16.mxu0 0
  %225 = vmatpush1.bf16.msra.mxu0 0
  %226 = vmatprep.subr.bf16.mxu0 0
  %227 = vmatpush1.bf16.msra.mxu0 0
  %228 = vmatprep.subr.bf16.mxu0 0
  %229 = vmatpush1.bf16.msra.mxu0 0
  %230 = vmatprep.mubr.bf16.mxu0 0
  %231 = vmatmul.mubr.bf16.gmra.mrb[0].mxu0 %v183
  %v232 = vpop.f32.mrb[0].mxu0
  %v233 = vadd.f32 %v158, %v232
  %v234 = vpop.f32.mrb[0].mxu0
  %v235 = vpop.f32.mrb[0].mxu0
  %v236 = vadd.f32 %v158, %v235
  %v237 = vpop.f32.mrb[0].mxu0
  %238 = vmatprep.mubr.bf16.mxu0 0
  %239 = vmatmul.mubr.bf16.gmra.mrb[0].mxu0 %v186
  %v240 = vpop.f32.mrb[0].mxu0
  %v241 = vadd.f32 %v158, %v240
  %v242 = vpop.f32.mrb[0].mxu0
  %v243 = vpop.f32.mrb[0].mxu0
  %v244 = vadd.f32 %v158, %v243
  %v245 = vpop.f32.mrb[0].mxu0
  %246 = vmatprep.mubr.bf16.mxu0 0
  %247 = vmatmul.mubr.bf16.gmra.mrb[0].mxu0 %v189
  %v248 = vpop.f32.mrb[0].mxu0
  %v249 = vadd.f32 %v158, %v248
  %v250 = vpop.f32.mrb[0].mxu0
  %v251 = vpop.f32.mrb[0].mxu0
  %v252 = vadd.f32 %v158, %v251
  %v253 = vpop.f32.mrb[0].mxu0
  %254 = vmatprep.mubr.bf16.mxu0 0
  %255 = vmatmul.mubr.bf16.gmra.mrb[0].mxu0 %v192
  %v256 = vpop.f32.mrb[0].mxu0
  %v257 = vadd.f32 %v158, %v256
  %v258 = vpop.f32.mrb[0].mxu0
  %v259 = vpop.f32.mrb[0].mxu0
  %v260 = vadd.f32 %v158, %v259
  %v261 = vpop.f32.mrb[0].mxu0
  %262 = vdwg.mxu0
  %vm263 = vcmask 15360
  %264 = vst.msk [vmem:[%s5] sm:$0xff] %vm263, %v233
  %265 = vst.msk [vmem:[%s5 + $0x8] sm:$0xff] %vm263, %v236
  %266 = vst.msk [vmem:[%s5 + $0x10] sm:$0xff] %vm263, %v241
  %267 = vst.msk [vmem:[%s5 + $0x18] sm:$0xff] %vm263, %v244
  %268 = vst.msk [vmem:[%s5 + $0x20] sm:$0xff] %vm263, %v249
  %269 = vst.msk [vmem:[%s5 + $0x28] sm:$0xff] %vm263, %v252
  %270 = vst.msk [vmem:[%s5 + $0x30] sm:$0xff] %vm263, %v257
  %271 = vst.msk [vmem:[%s5 + $0x38] sm:$0xff] %vm263, %v260
  // Predicated region
  $region22: #{net_forward.1} parent=0 // pred_check
    _
  $region23: #{net_forward.1} parent=0 // pred_check_branch
    %273 = sbr.rel (0) target = $region25
  $region24: #{net_forward.1} parent=0 // pred_region
    _
  $region25: #{net_forward.1} parent=0 // pred_fallthru
    _
  // Predicated region
  $region26: #{net_forward.1} parent=0 // pred_check
    _
  $region27: #{net_forward.1} parent=0 // pred_check_branch
    %275 = sbr.rel (0) target = $region29
  $region28: #{net_forward.1} parent=0 // pred_region
    _
  $region29: #{net_forward.1} parent=0 // pred_fallthru
    _

</llo_original>
